<compile_context>
chip_gen: v7x
topology: tpu7x:2x2x1
jax: 0.10.0
libtpu: 0.0.40
codegen_flags: <defaults>
</compile_context>

<pallas_src>
import math

import jax
import jax.numpy as jnp
from jax.experimental import pallas as pl
from jax.experimental.pallas import tpu as pltpu


def _hidden4_fnn_kernel(
    x_ref,
    w1_ref, b1_ref,
    w2_ref, b2_ref,
    w3_ref, b3_ref,
    w4_ref, b4_ref,
    w5_ref, b5_ref,
    o_ref,
):
    """Fused 5-layer MLP on one batch tile.

    x_ref:  (TB, in)       VMEM tile of the input batch
    wN_ref: (inN, outN)    weights, already transposed to [in, out]
    bN_ref: (1, outN)      biases (2-D for clean lane layout / broadcast)
    o_ref:  (TB, out)      output tile
    """

    def dense(h, w_ref, b_ref):
        # Plain h @ W (W already [in, out]) -> direct MXU matmul, f32 accum.
        y = jnp.dot(h, w_ref[...], preferred_element_type=jnp.float32)
        return y + b_ref[...]  # (1, out) broadcasts over the batch tile

    h = x_ref[...].astype(jnp.float32)
    h = jnp.maximum(dense(h, w1_ref, b1_ref), 0.0)
    h = jnp.maximum(dense(h, w2_ref, b2_ref), 0.0)
    h = jnp.maximum(dense(h, w3_ref, b3_ref), 0.0)
    h = jnp.maximum(dense(h, w4_ref, b4_ref), 0.0)
    h = dense(h, w5_ref, b5_ref)  # final layer: no activation
    o_ref[...] = h.astype(o_ref.dtype)


def hidden4_fnn_forward(x, params, *, block_b=512):
    """Forward pass of hidden4_FNN.

    x:       [B, input_size] float32
    params:  (w1, b1, w2, b2, w3, b3, w4, b4, w5, b5) with PyTorch layouts
             wN: [outN, inN], bN: [outN]
    returns: [B, output_size] float32
    """
    w1, b1, w2, b2, w3, b3, w4, b4, w5, b5 = params
    B, in_size = x.shape
    out_size = w5.shape[0]

    # One-time layout plumbing in the wrapper: weights -> [in, out], biases ->
    # (1, out).  Keeps the kernel body free of transposes.
    w1_t, w2_t, w3_t, w4_t, w5_t = (w.T for w in (w1, w2, w3, w4, w5))
    b1_2d, b2_2d, b3_2d, b4_2d, b5_2d = (b.reshape(1, -1) for b in (b1, b2, b3, b4, b5))

    # Batch tiling: single full-array block for small B, otherwise tile B in
    # `block_b`-row chunks (pad so every block is full -> no masked partial
    # tiles in the pipeline).
    if B <= block_b:
        tb = B
        x_p = x
        n_blocks = 1
    else:
        tb = block_b
        b_pad = pl.cdiv(B, tb) * tb
        x_p = x if b_pad == B else jnp.pad(x, ((0, b_pad - B), (0, 0)))
        n_blocks = b_pad // tb

    batch_spec_in = pl.BlockSpec((tb, in_size), lambda i: (i, 0))
    batch_spec_out = pl.BlockSpec((tb, out_size), lambda i: (i, 0))

    def full(arr):
        # Whole-array block, identical index for every grid step -> the tile
        # stays resident in VMEM across the batch loop (no re-DMA).
        return pl.BlockSpec(arr.shape, lambda i: (0, 0))

    out = pl.pallas_call(
        _hidden4_fnn_kernel,
        out_shape=jax.ShapeDtypeStruct((n_blocks * tb, out_size), jnp.float32),
        grid_spec=pl.GridSpec(
            grid=(n_blocks,),
            in_specs=[
                batch_spec_in,
                full(w1_t), full(b1_2d),
                full(w2_t), full(b2_2d),
                full(w3_t), full(b3_2d),
                full(w4_t), full(b4_2d),
                full(w5_t), full(b5_2d),
            ],
            out_specs=batch_spec_out,
        ),
        compiler_params=pltpu.CompilerParams(
            dimension_semantics=("parallel",),
        ),
    )(
        x_p,
        w1_t, b1_2d,
        w2_t, b2_2d,
        w3_t, b3_2d,
        w4_t, b4_2d,
        w5_t, b5_2d,
    )
    return out[:B]


def _init_linear(key, out_features, in_features):
    """Deterministic init mimicking nn.Linear defaults (U[-1/sqrt(fan_in), +])."""
    k_w, k_b = jax.random.split(key)
    bound = 1.0 / math.sqrt(in_features)
    w = jax.random.uniform(
        k_w, (out_features, in_features), dtype=jnp.float32,
        minval=-bound, maxval=bound,
    )
    b = jax.random.uniform(
        k_b, (out_features,), dtype=jnp.float32, minval=-bound, maxval=bound,
    )
    return w, b


if __name__ == "__main__":
    key = jax.random.PRNGKey(0)
    k_x, k1, k2, k3, k4, k5 = jax.random.split(key, 6)

    # Small shapes consistent with the module: 4 hidden layers + output.
    batch = 8
    input_size, h1, h2, h3, h4, output_size = 16, 32, 32, 32, 32, 8

    w1, b1 = _init_linear(k1, h1, input_size)
    w2, b2 = _init_linear(k2, h2, h1)
    w3, b3 = _init_linear(k3, h3, h2)
    w4, b4 = _init_linear(k4, h4, h3)
    w5, b5 = _init_linear(k5, output_size, h4)
    params = (w1, b1, w2, b2, w3, b3, w4, b4, w5, b5)

    x = jax.random.normal(k_x, (batch, input_size), dtype=jnp.float32)

    out = hidden4_fnn_forward(x, params)
    out = jax.block_until_ready(out)

    # Pure-JAX reference of the same forward pass.
    def ref_forward(x):
        h = jnp.maximum(x @ w1.T + b1, 0.0)
        h = jnp.maximum(h @ w2.T + b2, 0.0)
        h = jnp.maximum(h @ w3.T + b3, 0.0)
        h = jnp.maximum(h @ w4.T + b4, 0.0)
        return h @ w5.T + b5

    ref = ref_forward(x)
    assert out.shape == (batch, output_size)
    assert jnp.allclose(out, ref, atol=1e-4, rtol=1e-4), (
        f"max abs err = {jnp.max(jnp.abs(out - ref))}"
    )

    print("KERNEL_OK")
</pallas_src>

<mosaic_0001>
module attributes {stable_mosaic.version = 11 : i64} {
  func.func @_hidden4_fnn_kernel(%arg0: i32, %arg1: memref<8x16xf32, #tpu.memory_space<vmem>>, %arg2: memref<16x32xf32, #tpu.memory_space<vmem>>, %arg3: memref<1x32xf32, #tpu.memory_space<vmem>>, %arg4: memref<32x32xf32, #tpu.memory_space<vmem>>, %arg5: memref<1x32xf32, #tpu.memory_space<vmem>>, %arg6: memref<32x32xf32, #tpu.memory_space<vmem>>, %arg7: memref<1x32xf32, #tpu.memory_space<vmem>>, %arg8: memref<32x32xf32, #tpu.memory_space<vmem>>, %arg9: memref<1x32xf32, #tpu.memory_space<vmem>>, %arg10: memref<32x8xf32, #tpu.memory_space<vmem>>, %arg11: memref<1x8xf32, #tpu.memory_space<vmem>>, %arg12: memref<8x8xf32, #tpu.memory_space<vmem>>) attributes {dimension_semantics = [#tpu.dimension_semantics<parallel>], iteration_bounds = array<i64: 1>, scalar_prefetch = 0 : i64, scratch_operands = 0 : i64, tpu.core_type = #tpu.core_type<tc>, window_params = [{transform_indices = @transform_0, window_bounds = array<i64: 8, 16>}, {pipeline_mode = #tpu.pipeline_mode<synchronous>, transform_indices = @transform_1, window_bounds = array<i64: 16, 32>}, {pipeline_mode = #tpu.pipeline_mode<synchronous>, transform_indices = @transform_2, window_bounds = array<i64: 1, 32>}, {pipeline_mode = #tpu.pipeline_mode<synchronous>, transform_indices = @transform_3, window_bounds = array<i64: 32, 32>}, {pipeline_mode = #tpu.pipeline_mode<synchronous>, transform_indices = @transform_4, window_bounds = array<i64: 1, 32>}, {pipeline_mode = #tpu.pipeline_mode<synchronous>, transform_indices = @transform_5, window_bounds = array<i64: 32, 32>}, {pipeline_mode = #tpu.pipeline_mode<synchronous>, transform_indices = @transform_6, window_bounds = array<i64: 1, 32>}, {pipeline_mode = #tpu.pipeline_mode<synchronous>, transform_indices = @transform_7, window_bounds = array<i64: 32, 32>}, {pipeline_mode = #tpu.pipeline_mode<synchronous>, transform_indices = @transform_8, window_bounds = array<i64: 1, 32>}, {pipeline_mode = #tpu.pipeline_mode<synchronous>, transform_indices = @transform_9, window_bounds = array<i64: 32, 8>}, {pipeline_mode = #tpu.pipeline_mode<synchronous>, transform_indices = @transform_10, window_bounds = array<i64: 1, 8>}, {transform_indices = @transform_11, window_bounds = array<i64: 8, 8>}]} {
    %c0 = arith.constant 0 : index
    %c0_0 = arith.constant 0 : index
    %0 = vector.load %arg1[%c0, %c0_0] : memref<8x16xf32, #tpu.memory_space<vmem>>, vector<8x16xf32>
    %c0_1 = arith.constant 0 : index
    %c0_2 = arith.constant 0 : index
    %1 = vector.load %arg2[%c0_1, %c0_2] : memref<16x32xf32, #tpu.memory_space<vmem>>, vector<16x32xf32>
    %cst = arith.constant dense<0.000000e+00> : vector<8x32xf32>
    %2 = tpu.matmul %0, %1, %cst {dimension_numbers = #tpu.dot_dimension_numbers<[1], [0], [0], [1], [0, 0, 1, 1], [], []>} : vector<8x16xf32>, vector<16x32xf32>, vector<8x32xf32> -> vector<8x32xf32>
    %c0_3 = arith.constant 0 : index
    %c0_4 = arith.constant 0 : index
    %3 = vector.load %arg3[%c0_3, %c0_4] : memref<1x32xf32, #tpu.memory_space<vmem>>, vector<1x32xf32>
    %4 = vector.broadcast %3 : vector<1x32xf32> to vector<8x32xf32>
    %5 = arith.addf %2, %4 : vector<8x32xf32>
    %cst_5 = arith.constant 0.000000e+00 : f32
    %6 = vector.broadcast %cst_5 : f32 to vector<8x32xf32>
    %7 = arith.maximumf %5, %6 : vector<8x32xf32>
    %c0_6 = arith.constant 0 : index
    %c0_7 = arith.constant 0 : index
    %8 = vector.load %arg4[%c0_6, %c0_7] : memref<32x32xf32, #tpu.memory_space<vmem>>, vector<32x32xf32>
    %cst_8 = arith.constant dense<0.000000e+00> : vector<8x32xf32>
    %9 = tpu.matmul %7, %8, %cst_8 {dimension_numbers = #tpu.dot_dimension_numbers<[1], [0], [0], [1], [0, 0, 1, 1], [], []>} : vector<8x32xf32>, vector<32x32xf32>, vector<8x32xf32> -> vector<8x32xf32>
    %c0_9 = arith.constant 0 : index
    %c0_10 = arith.constant 0 : index
    %10 = vector.load %arg5[%c0_9, %c0_10] : memref<1x32xf32, #tpu.memory_space<vmem>>, vector<1x32xf32>
    %11 = vector.broadcast %10 : vector<1x32xf32> to vector<8x32xf32>
    %12 = arith.addf %9, %11 : vector<8x32xf32>
    %cst_11 = arith.constant 0.000000e+00 : f32
    %13 = vector.broadcast %cst_11 : f32 to vector<8x32xf32>
    %14 = arith.maximumf %12, %13 : vector<8x32xf32>
    %c0_12 = arith.constant 0 : index
    %c0_13 = arith.constant 0 : index
    %15 = vector.load %arg6[%c0_12, %c0_13] : memref<32x32xf32, #tpu.memory_space<vmem>>, vector<32x32xf32>
    %cst_14 = arith.constant dense<0.000000e+00> : vector<8x32xf32>
    %16 = tpu.matmul %14, %15, %cst_14 {dimension_numbers = #tpu.dot_dimension_numbers<[1], [0], [0], [1], [0, 0, 1, 1], [], []>} : vector<8x32xf32>, vector<32x32xf32>, vector<8x32xf32> -> vector<8x32xf32>
    %c0_15 = arith.constant 0 : index
    %c0_16 = arith.constant 0 : index
    %17 = vector.load %arg7[%c0_15, %c0_16] : memref<1x32xf32, #tpu.memory_space<vmem>>, vector<1x32xf32>
    %18 = vector.broadcast %17 : vector<1x32xf32> to vector<8x32xf32>
    %19 = arith.addf %16, %18 : vector<8x32xf32>
    %cst_17 = arith.constant 0.000000e+00 : f32
    %20 = vector.broadcast %cst_17 : f32 to vector<8x32xf32>
    %21 = arith.maximumf %19, %20 : vector<8x32xf32>
    %c0_18 = arith.constant 0 : index
    %c0_19 = arith.constant 0 : index
    %22 = vector.load %arg8[%c0_18, %c0_19] : memref<32x32xf32, #tpu.memory_space<vmem>>, vector<32x32xf32>
    %cst_20 = arith.constant dense<0.000000e+00> : vector<8x32xf32>
    %23 = tpu.matmul %21, %22, %cst_20 {dimension_numbers = #tpu.dot_dimension_numbers<[1], [0], [0], [1], [0, 0, 1, 1], [], []>} : vector<8x32xf32>, vector<32x32xf32>, vector<8x32xf32> -> vector<8x32xf32>
    %c0_21 = arith.constant 0 : index
    %c0_22 = arith.constant 0 : index
    %24 = vector.load %arg9[%c0_21, %c0_22] : memref<1x32xf32, #tpu.memory_space<vmem>>, vector<1x32xf32>
    %25 = vector.broadcast %24 : vector<1x32xf32> to vector<8x32xf32>
    %26 = arith.addf %23, %25 : vector<8x32xf32>
    %cst_23 = arith.constant 0.000000e+00 : f32
    %27 = vector.broadcast %cst_23 : f32 to vector<8x32xf32>
    %28 = arith.maximumf %26, %27 : vector<8x32xf32>
    %c0_24 = arith.constant 0 : index
    %c0_25 = arith.constant 0 : index
    %29 = vector.load %arg10[%c0_24, %c0_25] : memref<32x8xf32, #tpu.memory_space<vmem>>, vector<32x8xf32>
    %cst_26 = arith.constant dense<0.000000e+00> : vector<8x8xf32>
    %30 = tpu.matmul %28, %29, %cst_26 {dimension_numbers = #tpu.dot_dimension_numbers<[1], [0], [0], [1], [0, 0, 1, 1], [], []>} : vector<8x32xf32>, vector<32x8xf32>, vector<8x8xf32> -> vector<8x8xf32>
    %c0_27 = arith.constant 0 : index
    %c0_28 = arith.constant 0 : index
    %31 = vector.load %arg11[%c0_27, %c0_28] : memref<1x8xf32, #tpu.memory_space<vmem>>, vector<1x8xf32>
    %32 = vector.broadcast %31 : vector<1x8xf32> to vector<8x8xf32>
    %33 = arith.addf %30, %32 : vector<8x8xf32>
    %c0_29 = arith.constant 0 : index
    %c0_30 = arith.constant 0 : index
    %34 = vector.load %arg12[%c0_29, %c0_30] : memref<8x8xf32, #tpu.memory_space<vmem>>, vector<8x8xf32>
    tpu.vector_store %arg12[%c0_29, %c0_30], %33 {strides = array<i32>} : memref<8x8xf32, #tpu.memory_space<vmem>>, vector<8x8xf32>,
    return
  }
  func.func @transform_0(%arg0: i32) -> (i32, i32) {
    %c0_i32 = arith.constant 0 : i32
    %c0_i32_0 = arith.constant 0 : i32
    return %arg0, %c0_i32 : i32, i32
  }
  func.func @transform_1(%arg0: i32) -> (i32, i32) {
    %c0_i32 = arith.constant 0 : i32
    %c0_i32_0 = arith.constant 0 : i32
    %c0_i32_1 = arith.constant 0 : i32
    return %c0_i32, %c0_i32_0 : i32, i32
  }
  func.func @transform_2(%arg0: i32) -> (i32, i32) {
    %c0_i32 = arith.constant 0 : i32
    %c0_i32_0 = arith.constant 0 : i32
    %c0_i32_1 = arith.constant 0 : i32
    return %c0_i32, %c0_i32_0 : i32, i32
  }
  func.func @transform_3(%arg0: i32) -> (i32, i32) {
    %c0_i32 = arith.constant 0 : i32
    %c0_i32_0 = arith.constant 0 : i32
    %c0_i32_1 = arith.constant 0 : i32
    return %c0_i32, %c0_i32_0 : i32, i32
  }
  func.func @transform_4(%arg0: i32) -> (i32, i32) {
    %c0_i32 = arith.constant 0 : i32
    %c0_i32_0 = arith.constant 0 : i32
    %c0_i32_1 = arith.constant 0 : i32
    return %c0_i32, %c0_i32_0 : i32, i32
  }
  func.func @transform_5(%arg0: i32) -> (i32, i32) {
    %c0_i32 = arith.constant 0 : i32
    %c0_i32_0 = arith.constant 0 : i32
    %c0_i32_1 = arith.constant 0 : i32
    return %c0_i32, %c0_i32_0 : i32, i32
  }
  func.func @transform_6(%arg0: i32) -> (i32, i32) {
    %c0_i32 = arith.constant 0 : i32
    %c0_i32_0 = arith.constant 0 : i32
    %c0_i32_1 = arith.constant 0 : i32
    return %c0_i32, %c0_i32_0 : i32, i32
  }
  func.func @transform_7(%arg0: i32) -> (i32, i32) {
    %c0_i32 = arith.constant 0 : i32
    %c0_i32_0 = arith.constant 0 : i32
    %c0_i32_1 = arith.constant 0 : i32
    return %c0_i32, %c0_i32_0 : i32, i32
  }
  func.func @transform_8(%arg0: i32) -> (i32, i32) {
    %c0_i32 = arith.constant 0 : i32
    %c0_i32_0 = arith.constant 0 : i32
    %c0_i32_1 = arith.constant 0 : i32
    return %c0_i32, %c0_i32_0 : i32, i32
  }
  func.func @transform_9(%arg0: i32) -> (i32, i32) {
    %c0_i32 = arith.constant 0 : i32
    %c0_i32_0 = arith.constant 0 : i32
    %c0_i32_1 = arith.constant 0 : i32
    return %c0_i32, %c0_i32_0 : i32, i32
  }
  func.func @transform_10(%arg0: i32) -> (i32, i32) {
    %c0_i32 = arith.constant 0 : i32
    %c0_i32_0 = arith.constant 0 : i32
    %c0_i32_1 = arith.constant 0 : i32
    return %c0_i32, %c0_i32_0 : i32, i32
  }
  func.func @transform_11(%arg0: i32) -> (i32, i32) {
    %c0_i32 = arith.constant 0 : i32
    %c0_i32_0 = arith.constant 0 : i32
    return %arg0, %c0_i32 : i32, i32
  }
}

</mosaic_0001>

<llo_original>
// kernel: tpu_custom_call.1
$region0: #{tpu_custom_call.1}
  #allocation0 [shape = 'u32[]', space=smem, size = 0x4, offset = 0x4, fixed_abs, tag = 'smem constant byte address 0x4 - core index']
  #allocation1 [shape = 'u32[144,128]{1,0:T(1,128)}', space=vmem, size = 0x12000, scoped, tag = 'internal scratch']
  %s0 = inlined_call_operand.hbm [shape: f32[8,16], index: 0, kind: input, shape index: {}]
  %s1 = inlined_call_operand.hbm [shape: f32[16,32], index: 1, kind: input, shape index: {}]
  %s2 = inlined_call_operand.vmem [shape: f32[1,32], index: 2, kind: input, shape index: {}]
  %s3 = inlined_call_operand.vmem [shape: f32[32,32], index: 3, kind: input, shape index: {}]
  %s4 = inlined_call_operand.vmem [shape: f32[1,32], index: 4, kind: input, shape index: {}]
  %s5 = inlined_call_operand.hbm [shape: f32[32,32], index: 5, kind: input, shape index: {}]
  %s6 = inlined_call_operand.hbm [shape: f32[1,32], index: 6, kind: input, shape index: {}]
  %s7 = inlined_call_operand.vmem [shape: f32[32,32], index: 7, kind: input, shape index: {}]
  %s8 = inlined_call_operand.hbm [shape: f32[1,32], index: 8, kind: input, shape index: {}]
  %s9 = inlined_call_operand.vmem [shape: f32[32,8], index: 9, kind: input, shape index: {}]
  %s10 = inlined_call_operand.vmem [shape: f32[1,8], index: 10, kind: input, shape index: {}]
  %s11 = inlined_call_operand.hbm [shape: f32[8,8], index: 11, kind: output, shape index: {}]
  %s12 = sld [smem:[#allocation0]]
  $region74: #{tpu_custom_call.1} parent=0
    _
  %s14 = ssub.s32 1, %s12
  %s15 = scalar_select 0, %s14, %s12
  $region1: #{tpu_custom_call.1} parent=0
    #allocation2 [shape = 'u8[4096]{0}', space=vmem, size = 0x1000, scoped, tag = 'input window, operand 0, single buffered']
    #allocation3 [shape = 's32[1]{0}', space=sflag, size = 0x4, scoped, tag = 'scoped memory for tpu_custom_call.1']
    #allocation4 [shape = 's32[1]{0}', space=sflag, size = 0x4, scoped, tag = 'scoped memory for tpu_custom_call.1']
    #allocation5 [shape = 'u8[8192]{0}', space=vmem, size = 0x2000, scoped, tag = 'input window, operand 1, single buffered']
    #allocation6 [shape = 's32[1]{0}', space=sflag, size = 0x4, scoped, tag = 'scoped memory for tpu_custom_call.1']
    #allocation7 [shape = 'u8[16384]{0}', space=vmem, size = 0x4000, scoped, tag = 'input window, operand 5, single buffered']
    #allocation8 [shape = 'u8[512]{0}', space=vmem, size = 0x400, scoped, tag = 'input window, operand 6, single buffered']
    #allocation9 [shape = 's32[1]{0}', space=sflag, size = 0x4, scoped, tag = 'scoped memory for tpu_custom_call.1']
    #allocation10 [shape = 'u8[512]{0}', space=vmem, size = 0x400, scoped, tag = 'input window, operand 8, single buffered']
    #allocation11 [shape = 'u8[4096]{0}', space=vmem, size = 0x1000, scoped, tag = 'output window, operand 0, single buffered']
    %16 = vsyncpa [#allocation3], 0
    %17 = vsyncpa [#allocation6], 0
    %18 = vsyncpa [#allocation9], 0
    %19 = vsyncpa [#allocation4], 0
    // Predicated region
    $region2: #{tpu_custom_call.1} parent=1 // pred_check
      _
    $region3: #{tpu_custom_call.1} parent=1 // pred_check_branch
      %21 = sbr.rel (0) target = $region5
    $region4: #{tpu_custom_call.1} parent=1 // pred_region
      %s23 = ssub.s32 128, 128
      %24 = vsyncadd [#allocation3], %s23
      %s26 = sshll.u32 [#allocation2], 4
      %s27 = int_to_ptr.vmem [resolvable:$true] %s26
      %29 = dma.hbm_to_vmem [thread:$0]  %s0, 128, %s27, [#allocation3]
    $region5: #{tpu_custom_call.1} parent=1 // pred_fallthru
      _
    // Predicated region
    $region6: #{tpu_custom_call.1} parent=1 // pred_check
      _
    $region7: #{tpu_custom_call.1} parent=1 // pred_check_branch
      %31 = sbr.rel (0) target = $region9
    $region8: #{tpu_custom_call.1} parent=1 // pred_region
      %s33 = ssub.s32 256, 256
      %34 = vsyncadd [#allocation6], %s33
      %s35 = sshll.u32 [#allocation5], 4
      %s36 = int_to_ptr.vmem [resolvable:$true] %s35
      %41 = dma.hbm_to_vmem [thread:$0]  %s1, 256, %s36, [#allocation6], 128, 128, 8
    $region9: #{tpu_custom_call.1} parent=1 // pred_fallthru
      _
    // Predicated region
    $region10: #{tpu_custom_call.1} parent=1 // pred_check
      _
    $region11: #{tpu_custom_call.1} parent=1 // pred_check_branch
      %43 = sbr.rel (0) target = $region13
    $region12: #{tpu_custom_call.1} parent=1 // pred_region
      _
    $region13: #{tpu_custom_call.1} parent=1 // pred_fallthru
      _
    // Predicated region
    $region14: #{tpu_custom_call.1} parent=1 // pred_check
      _
    $region15: #{tpu_custom_call.1} parent=1 // pred_check_branch
      %45 = sbr.rel (0) target = $region17
    $region16: #{tpu_custom_call.1} parent=1 // pred_region
      _
    $region17: #{tpu_custom_call.1} parent=1 // pred_fallthru
      _
    // Predicated region
    $region18: #{tpu_custom_call.1} parent=1 // pred_check
      _
    $region19: #{tpu_custom_call.1} parent=1 // pred_check_branch
      %47 = sbr.rel (0) target = $region21
    $region20: #{tpu_custom_call.1} parent=1 // pred_region
      _
    $region21: #{tpu_custom_call.1} parent=1 // pred_fallthru
      _
    // Predicated region
    $region22: #{tpu_custom_call.1} parent=1 // pred_check
      _
    $region23: #{tpu_custom_call.1} parent=1 // pred_check_branch
      %49 = sbr.rel (0) target = $region25
    $region24: #{tpu_custom_call.1} parent=1 // pred_region
      %s51 = ssub.s32 512, 512
      %52 = vsyncadd [#allocation6], %s51
      %s53 = sshll.u32 [#allocation7], 4
      %s54 = int_to_ptr.vmem [resolvable:$true] %s53
      %59 = dma.hbm_to_vmem [thread:$0]  %s5, 512, %s54, [#allocation6], 128, 128, 8
    $region25: #{tpu_custom_call.1} parent=1 // pred_fallthru
      _
    // Predicated region
    $region26: #{tpu_custom_call.1} parent=1 // pred_check
      _
    $region27: #{tpu_custom_call.1} parent=1 // pred_check_branch
      %61 = sbr.rel (0) target = $region29
    $region28: #{tpu_custom_call.1} parent=1 // pred_region
      %s63 = ssub.s32 16, 16
      %64 = vsyncadd [#allocation9], %s63
      %s66 = sshll.u32 [#allocation8], 4
      %s67 = int_to_ptr.vmem [resolvable:$true] %s66
      %69 = dma.hbm_to_vmem [thread:$0]  %s6, 16, %s67, [#allocation9]
    $region29: #{tpu_custom_call.1} parent=1 // pred_fallthru
      _
    // Predicated region
    $region30: #{tpu_custom_call.1} parent=1 // pred_check
      _
    $region31: #{tpu_custom_call.1} parent=1 // pred_check_branch
      %71 = sbr.rel (0) target = $region33
    $region32: #{tpu_custom_call.1} parent=1 // pred_region
      _
    $region33: #{tpu_custom_call.1} parent=1 // pred_fallthru
      _
    // Predicated region
    $region34: #{tpu_custom_call.1} parent=1 // pred_check
      _
    $region35: #{tpu_custom_call.1} parent=1 // pred_check_branch
      %73 = sbr.rel (0) target = $region37
    $region36: #{tpu_custom_call.1} parent=1 // pred_region
      %s75 = ssub.s32 16, 16
      %76 = vsyncadd [#allocation9], %s75
      %s78 = sshll.u32 [#allocation10], 4
      %s79 = int_to_ptr.vmem [resolvable:$true] %s78
      %81 = dma.hbm_to_vmem [thread:$0]  %s8, 16, %s79, [#allocation9]
    $region37: #{tpu_custom_call.1} parent=1 // pred_fallthru
      _
    // Predicated region
    $region38: #{tpu_custom_call.1} parent=1 // pred_check
      _
    $region39: #{tpu_custom_call.1} parent=1 // pred_check_branch
      %83 = sbr.rel (0) target = $region41
    $region40: #{tpu_custom_call.1} parent=1 // pred_region
      _
    $region41: #{tpu_custom_call.1} parent=1 // pred_fallthru
      _
    // Predicated region
    $region42: #{tpu_custom_call.1} parent=1 // pred_check
      _
    $region43: #{tpu_custom_call.1} parent=1 // pred_check_branch
      %85 = sbr.rel (0) target = $region45
    $region44: #{tpu_custom_call.1} parent=1 // pred_region
      _
    $region45: #{tpu_custom_call.1} parent=1 // pred_fallthru
      _
    // Predicated region
    $region46: #{tpu_custom_call.1} parent=1 // pred_check
      _
    $region47: #{tpu_custom_call.1} parent=1 // pred_check_branch
      %87 = sbr.rel (0) target = $region49
    $region48: #{tpu_custom_call.1} parent=1 // pred_region
      %88 = dma.done [#allocation3], 128
    $region49: #{tpu_custom_call.1} parent=1 // pred_fallthru
      _
    // Predicated region
    $region50: #{tpu_custom_call.1} parent=1 // pred_check
      _
    $region51: #{tpu_custom_call.1} parent=1 // pred_check_branch
      %90 = sbr.rel (0) target = $region53
    $region52: #{tpu_custom_call.1} parent=1 // pred_region
      %91 = dma.done [#allocation6], 256
    $region53: #{tpu_custom_call.1} parent=1 // pred_fallthru
      _
    // Predicated region
    $region54: #{tpu_custom_call.1} parent=1 // pred_check
      _
    $region55: #{tpu_custom_call.1} parent=1 // pred_check_branch
      %93 = sbr.rel (0) target = $region57
    $region56: #{tpu_custom_call.1} parent=1 // pred_region
      %94 = dma.done [#allocation6], 512
    $region57: #{tpu_custom_call.1} parent=1 // pred_fallthru
      _
    // Predicated region
    $region58: #{tpu_custom_call.1} parent=1 // pred_check
      _
    $region59: #{tpu_custom_call.1} parent=1 // pred_check_branch
      %96 = sbr.rel (0) target = $region61
    $region60: #{tpu_custom_call.1} parent=1 // pred_region
      %97 = dma.done [#allocation9], 16
    $region61: #{tpu_custom_call.1} parent=1 // pred_fallthru
      _
    // Predicated region
    $region62: #{tpu_custom_call.1} parent=1 // pred_check
      _
    $region63: #{tpu_custom_call.1} parent=1 // pred_check_branch
      %99 = sbr.rel (0) target = $region65
    $region64: #{tpu_custom_call.1} parent=1 // pred_region
      %100 = dma.done [#allocation9], 16
    $region65: #{tpu_custom_call.1} parent=1 // pred_fallthru
      _
    %v101 = vld [vmem:[#allocation2] sm:$0xff]
    %v102 = vld [vmem:[#allocation5] sm:$0xff]
    %v103 = vld [vmem:[#allocation5 + $0x8] sm:$0xff]
    %v104 = vld [vmem:[%s2] sm:$0x1]
    %v106 = vlaneseq
    %v107 = vshrl.u32 %v106, 7
    %v108 = vsub.s32 0, %v107
    %v109 = vrot.slane %v104, %v108
    %vm111 = vcmask 130048
    %v113 = vsel %vm111, %v101, 0
    %115 = vmatprep.subr.mxu0 0.0
    %116 = vmatpush1.msra.mxu0 %v102
    %117 = vmatprep.subr.mxu0 0.0
    %118 = vmatpush1.msra.mxu0 %v103
    %119 = vmatprep.subr.mxu0 0.0
    %120 = vmatpush1.msra.mxu0 0.0
    %121 = vmatprep.subr.mxu0 0.0
    %122 = vmatpush1.msra.mxu0 0.0
    %123 = vmatprep.subr.mxu0 0.0
    %124 = vmatpush1.msra.mxu0 0.0
    %125 = vmatprep.subr.mxu0 0.0
    %126 = vmatpush1.msra.mxu0 0.0
    %127 = vmatprep.subr.mxu0 0.0
    %128 = vmatpush1.msra.mxu0 0.0
    %129 = vmatprep.subr.mxu0 0.0
    %130 = vmatpush1.msra.mxu0 0.0
    %131 = vmatprep.subr.mxu0 0.0
    %132 = vmatpush1.msra.mxu0 0.0
    %133 = vmatprep.subr.mxu0 0.0
    %134 = vmatpush1.msra.mxu0 0.0
    %135 = vmatprep.subr.mxu0 0.0
    %136 = vmatpush1.msra.mxu0 0.0
    %137 = vmatprep.subr.mxu0 0.0
    %138 = vmatpush1.msra.mxu0 0.0
    %139 = vmatprep.subr.mxu0 0.0
    %140 = vmatpush1.msra.mxu0 0.0
    %141 = vmatprep.subr.mxu0 0.0
    %142 = vmatpush1.msra.mxu0 0.0
    %143 = vmatprep.subr.mxu0 0.0
    %144 = vmatpush1.msra.mxu0 0.0
    %145 = vmatprep.subr.mxu0 0.0
    %146 = vmatpush1.msra.mxu0 0.0
    %147 = vmatprep.subr.mxu0 0.0
    %148 = vmatpush1.msra.mxu0 0.0
    %149 = vmatprep.subr.mxu0 0.0
    %150 = vmatpush1.msra.mxu0 0.0
    %151 = vmatprep.subr.mxu0 0.0
    %152 = vmatpush1.msra.mxu0 0.0
    %153 = vmatprep.subr.mxu0 0.0
    %154 = vmatpush1.msra.mxu0 0.0
    %155 = vmatprep.subr.mxu0 0.0
    %156 = vmatpush1.msra.mxu0 0.0
    %157 = vmatprep.subr.mxu0 0.0
    %158 = vmatpush1.msra.mxu0 0.0
    %159 = vmatprep.subr.mxu0 0.0
    %160 = vmatpush1.msra.mxu0 0.0
    %161 = vmatprep.subr.mxu0 0.0
    %162 = vmatpush1.msra.mxu0 0.0
    %163 = vmatprep.subr.mxu0 0.0
    %164 = vmatpush1.msra.mxu0 0.0
    %165 = vmatprep.subr.mxu0 0.0
    %166 = vmatpush1.msra.mxu0 0.0
    %167 = vmatprep.subr.mxu0 0.0
    %168 = vmatpush1.msra.mxu0 0.0
    %169 = vmatprep.subr.mxu0 0.0
    %170 = vmatpush1.msra.mxu0 0.0
    %171 = vmatprep.subr.mxu0 0.0
    %172 = vmatpush1.msra.mxu0 0.0
    %173 = vmatprep.subr.mxu0 0.0
    %174 = vmatpush1.msra.mxu0 0.0
    %175 = vmatprep.subr.mxu0 0.0
    %176 = vmatpush1.msra.mxu0 0.0
    %177 = vmatprep.subr.mxu0 0.0
    %178 = vmatpush1.msra.mxu0 0.0
    %179 = vmatprep.mubr.f32.mxu0 0.0
    %180 = vmatmul.mubr.f32.gmra.mrb[0].mxu0 %v113
    %v181 = vpop.f32.mrb[0].mxu0
    %v182 = vadd.f32 %v109, %v181
    %v183 = vpop.f32.mrb[0].mxu0
    %184 = vdwg.mxu0
    %v185 = vmax.f32 %v182, 0.0
    %v186 = vld [vmem:[%s3] sm:$0xff]
    %v187 = vld [vmem:[%s3 + $0x8] sm:$0xff]
    %v188 = vld [vmem:[%s3 + $0x10] sm:$0xff]
    %v189 = vld [vmem:[%s3 + $0x18] sm:$0xff]
    %v190 = vld [vmem:[%s4] sm:$0x1]
    %v192 = vlaneseq
    %v193 = vshrl.u32 %v192, 7
    %v194 = vsub.s32 0, %v193
    %v195 = vrot.slane %v190, %v194
    %vm197 = vcmask 261120
    %v199 = vsel %vm197, %v185, 0
    %201 = vmatprep.subr.mxu0 0.0
    %202 = vmatpush1.msra.mxu0 %v186
    %203 = vmatprep.subr.mxu0 0.0
    %204 = vmatpush1.msra.mxu0 %v187
    %205 = vmatprep.subr.mxu0 0.0
    %206 = vmatpush1.msra.mxu0 %v188
    %207 = vmatprep.subr.mxu0 0.0
    %208 = vmatpush1.msra.mxu0 %v189
    %209 = vmatprep.subr.mxu0 0.0
    %210 = vmatpush1.msra.mxu0 0.0
    %211 = vmatprep.subr.mxu0 0.0
    %212 = vmatpush1.msra.mxu0 0.0
    %213 = vmatprep.subr.mxu0 0.0
    %214 = vmatpush1.msra.mxu0 0.0
    %215 = vmatprep.subr.mxu0 0.0
    %216 = vmatpush1.msra.mxu0 0.0
    %217 = vmatprep.subr.mxu0 0.0
    %218 = vmatpush1.msra.mxu0 0.0
    %219 = vmatprep.subr.mxu0 0.0
    %220 = vmatpush1.msra.mxu0 0.0
    %221 = vmatprep.subr.mxu0 0.0
    %222 = vmatpush1.msra.mxu0 0.0
    %223 = vmatprep.subr.mxu0 0.0
    %224 = vmatpush1.msra.mxu0 0.0
    %225 = vmatprep.subr.mxu0 0.0
    %226 = vmatpush1.msra.mxu0 0.0
    %227 = vmatprep.subr.mxu0 0.0
    %228 = vmatpush1.msra.mxu0 0.0
    %229 = vmatprep.subr.mxu0 0.0
    %230 = vmatpush1.msra.mxu0 0.0
    %231 = vmatprep.subr.mxu0 0.0
    %232 = vmatpush1.msra.mxu0 0.0
    %233 = vmatprep.subr.mxu0 0.0
    %234 = vmatpush1.msra.mxu0 0.0
    %235 = vmatprep.subr.mxu0 0.0
    %236 = vmatpush1.msra.mxu0 0.0
    %237 = vmatprep.subr.mxu0 0.0
    %238 = vmatpush1.msra.mxu0 0.0
    %239 = vmatprep.subr.mxu0 0.0
    %240 = vmatpush1.msra.mxu0 0.0
    %241 = vmatprep.subr.mxu0 0.0
    %242 = vmatpush1.msra.mxu0 0.0
    %243 = vmatprep.subr.mxu0 0.0
    %244 = vmatpush1.msra.mxu0 0.0
    %245 = vmatprep.subr.mxu0 0.0
    %246 = vmatpush1.msra.mxu0 0.0
    %247 = vmatprep.subr.mxu0 0.0
    %248 = vmatpush1.msra.mxu0 0.0
    %249 = vmatprep.subr.mxu0 0.0
    %250 = vmatpush1.msra.mxu0 0.0
    %251 = vmatprep.subr.mxu0 0.0
    %252 = vmatpush1.msra.mxu0 0.0
    %253 = vmatprep.subr.mxu0 0.0
    %254 = vmatpush1.msra.mxu0 0.0
    %255 = vmatprep.subr.mxu0 0.0
    %256 = vmatpush1.msra.mxu0 0.0
    %257 = vmatprep.subr.mxu0 0.0
    %258 = vmatpush1.msra.mxu0 0.0
    %259 = vmatprep.subr.mxu0 0.0
    %260 = vmatpush1.msra.mxu0 0.0
    %261 = vmatprep.subr.mxu0 0.0
    %262 = vmatpush1.msra.mxu0 0.0
    %263 = vmatprep.subr.mxu0 0.0
    %264 = vmatpush1.msra.mxu0 0.0
    %265 = vmatprep.mubr.f32.mxu0 0.0
    %266 = vmatmul.mubr.f32.gmra.mrb[0].mxu0 %v199
    %v267 = vpop.f32.mrb[0].mxu0
    %v268 = vadd.f32 %v195, %v267
    %v269 = vpop.f32.mrb[0].mxu0
    %270 = vdwg.mxu0
    %v271 = vmax.f32 %v268, 0.0
    %v272 = vld [vmem:[#allocation7] sm:$0xff]
    %v273 = vld [vmem:[#allocation7 + $0x8] sm:$0xff]
    %v274 = vld [vmem:[#allocation7 + $0x10] sm:$0xff]
    %v275 = vld [vmem:[#allocation7 + $0x18] sm:$0xff]
    %v276 = vld [vmem:[#allocation8] sm:$0x1]
    %v278 = vlaneseq
    %v279 = vshrl.u32 %v278, 7
    %v280 = vsub.s32 0, %v279
    %v281 = vrot.slane %v276, %v280
    %v284 = vsel %vm197, %v271, 0
    %286 = vmatprep.subr.mxu0 0.0
    %287 = vmatpush1.msra.mxu0 %v272
    %288 = vmatprep.subr.mxu0 0.0
    %289 = vmatpush1.msra.mxu0 %v273
    %290 = vmatprep.subr.mxu0 0.0
    %291 = vmatpush1.msra.mxu0 %v274
    %292 = vmatprep.subr.mxu0 0.0
    %293 = vmatpush1.msra.mxu0 %v275
    %294 = vmatprep.subr.mxu0 0.0
    %295 = vmatpush1.msra.mxu0 0.0
    %296 = vmatprep.subr.mxu0 0.0
    %297 = vmatpush1.msra.mxu0 0.0
    %298 = vmatprep.subr.mxu0 0.0
    %299 = vmatpush1.msra.mxu0 0.0
    %300 = vmatprep.subr.mxu0 0.0
    %301 = vmatpush1.msra.mxu0 0.0
    %302 = vmatprep.subr.mxu0 0.0
    %303 = vmatpush1.msra.mxu0 0.0
    %304 = vmatprep.subr.mxu0 0.0
    %305 = vmatpush1.msra.mxu0 0.0
    %306 = vmatprep.subr.mxu0 0.0
    %307 = vmatpush1.msra.mxu0 0.0
    %308 = vmatprep.subr.mxu0 0.0
    %309 = vmatpush1.msra.mxu0 0.0
    %310 = vmatprep.subr.mxu0 0.0
    %311 = vmatpush1.msra.mxu0 0.0
    %312 = vmatprep.subr.mxu0 0.0
    %313 = vmatpush1.msra.mxu0 0.0
    %314 = vmatprep.subr.mxu0 0.0
    %315 = vmatpush1.msra.mxu0 0.0
    %316 = vmatprep.subr.mxu0 0.0
    %317 = vmatpush1.msra.mxu0 0.0
    %318 = vmatprep.subr.mxu0 0.0
    %319 = vmatpush1.msra.mxu0 0.0
    %320 = vmatprep.subr.mxu0 0.0
    %321 = vmatpush1.msra.mxu0 0.0
    %322 = vmatprep.subr.mxu0 0.0
    %323 = vmatpush1.msra.mxu0 0.0
    %324 = vmatprep.subr.mxu0 0.0
    %325 = vmatpush1.msra.mxu0 0.0
    %326 = vmatprep.subr.mxu0 0.0
    %327 = vmatpush1.msra.mxu0 0.0
    %328 = vmatprep.subr.mxu0 0.0
    %329 = vmatpush1.msra.mxu0 0.0
    %330 = vmatprep.subr.mxu0 0.0
    %331 = vmatpush1.msra.mxu0 0.0
    %332 = vmatprep.subr.mxu0 0.0
    %333 = vmatpush1.msra.mxu0 0.0
    %334 = vmatprep.subr.mxu0 0.0
    %335 = vmatpush1.msra.mxu0 0.0
    %336 = vmatprep.subr.mxu0 0.0
    %337 = vmatpush1.msra.mxu0 0.0
    %338 = vmatprep.subr.mxu0 0.0
    %339 = vmatpush1.msra.mxu0 0.0
    %340 = vmatprep.subr.mxu0 0.0
    %341 = vmatpush1.msra.mxu0 0.0
    %342 = vmatprep.subr.mxu0 0.0
    %343 = vmatpush1.msra.mxu0 0.0
    %344 = vmatprep.subr.mxu0 0.0
    %345 = vmatpush1.msra.mxu0 0.0
    %346 = vmatprep.subr.mxu0 0.0
    %347 = vmatpush1.msra.mxu0 0.0
    %348 = vmatprep.subr.mxu0 0.0
    %349 = vmatpush1.msra.mxu0 0.0
    %350 = vmatprep.mubr.f32.mxu0 0.0
    %351 = vmatmul.mubr.f32.gmra.mrb[0].mxu0 %v284
    %v352 = vpop.f32.mrb[0].mxu0
    %v353 = vadd.f32 %v281, %v352
    %v354 = vpop.f32.mrb[0].mxu0
    %355 = vdwg.mxu0
    %v356 = vmax.f32 %v353, 0.0
    %v357 = vld [vmem:[%s7] sm:$0xff]
    %v358 = vld [vmem:[%s7 + $0x8] sm:$0xff]
    %v359 = vld [vmem:[%s7 + $0x10] sm:$0xff]
    %v360 = vld [vmem:[%s7 + $0x18] sm:$0xff]
    %v361 = vld [vmem:[#allocation10] sm:$0x1]
    %v363 = vlaneseq
    %v364 = vshrl.u32 %v363, 7
    %v365 = vsub.s32 0, %v364
    %v366 = vrot.slane %v361, %v365
    %v369 = vsel %vm197, %v356, 0
    %371 = vmatprep.subr.mxu0 0.0
    %372 = vmatpush1.msra.mxu0 %v357
    %373 = vmatprep.subr.mxu0 0.0
    %374 = vmatpush1.msra.mxu0 %v358
    %375 = vmatprep.subr.mxu0 0.0
    %376 = vmatpush1.msra.mxu0 %v359
    %377 = vmatprep.subr.mxu0 0.0
    %378 = vmatpush1.msra.mxu0 %v360
    %379 = vmatprep.subr.mxu0 0.0
    %380 = vmatpush1.msra.mxu0 0.0
    %381 = vmatprep.subr.mxu0 0.0
    %382 = vmatpush1.msra.mxu0 0.0
    %383 = vmatprep.subr.mxu0 0.0
    %384 = vmatpush1.msra.mxu0 0.0
    %385 = vmatprep.subr.mxu0 0.0
    %386 = vmatpush1.msra.mxu0 0.0
    %387 = vmatprep.subr.mxu0 0.0
    %388 = vmatpush1.msra.mxu0 0.0
    %389 = vmatprep.subr.mxu0 0.0
    %390 = vmatpush1.msra.mxu0 0.0
    %391 = vmatprep.subr.mxu0 0.0
    %392 = vmatpush1.msra.mxu0 0.0
    %393 = vmatprep.subr.mxu0 0.0
    %394 = vmatpush1.msra.mxu0 0.0
    %395 = vmatprep.subr.mxu0 0.0
    %396 = vmatpush1.msra.mxu0 0.0
    %397 = vmatprep.subr.mxu0 0.0
    %398 = vmatpush1.msra.mxu0 0.0
    %399 = vmatprep.subr.mxu0 0.0
    %400 = vmatpush1.msra.mxu0 0.0
    %401 = vmatprep.subr.mxu0 0.0
    %402 = vmatpush1.msra.mxu0 0.0
    %403 = vmatprep.subr.mxu0 0.0
    %404 = vmatpush1.msra.mxu0 0.0
    %405 = vmatprep.subr.mxu0 0.0
    %406 = vmatpush1.msra.mxu0 0.0
    %407 = vmatprep.subr.mxu0 0.0
    %408 = vmatpush1.msra.mxu0 0.0
    %409 = vmatprep.subr.mxu0 0.0
    %410 = vmatpush1.msra.mxu0 0.0
    %411 = vmatprep.subr.mxu0 0.0
    %412 = vmatpush1.msra.mxu0 0.0
    %413 = vmatprep.subr.mxu0 0.0
    %414 = vmatpush1.msra.mxu0 0.0
    %415 = vmatprep.subr.mxu0 0.0
    %416 = vmatpush1.msra.mxu0 0.0
    %417 = vmatprep.subr.mxu0 0.0
    %418 = vmatpush1.msra.mxu0 0.0
    %419 = vmatprep.subr.mxu0 0.0
    %420 = vmatpush1.msra.mxu0 0.0
    %421 = vmatprep.subr.mxu0 0.0
    %422 = vmatpush1.msra.mxu0 0.0
    %423 = vmatprep.subr.mxu0 0.0
    %424 = vmatpush1.msra.mxu0 0.0
    %425 = vmatprep.subr.mxu0 0.0
    %426 = vmatpush1.msra.mxu0 0.0
    %427 = vmatprep.subr.mxu0 0.0
    %428 = vmatpush1.msra.mxu0 0.0
    %429 = vmatprep.subr.mxu0 0.0
    %430 = vmatpush1.msra.mxu0 0.0
    %431 = vmatprep.subr.mxu0 0.0
    %432 = vmatpush1.msra.mxu0 0.0
    %433 = vmatprep.subr.mxu0 0.0
    %434 = vmatpush1.msra.mxu0 0.0
    %435 = vmatprep.mubr.f32.mxu0 0.0
    %436 = vmatmul.mubr.f32.gmra.mrb[0].mxu0 %v369
    %v437 = vpop.f32.mrb[0].mxu0
    %v438 = vadd.f32 %v366, %v437
    %v439 = vpop.f32.mrb[0].mxu0
    %440 = vdwg.mxu0
    %v441 = vmax.f32 %v438, 0.0
    %v442 = vld [vmem:[%s9] sm:$0xff]
    %v443 = vld [vmem:[%s9 + $0x8] sm:$0xff]
    %v444 = vld [vmem:[%s9 + $0x10] sm:$0xff]
    %v445 = vld [vmem:[%s9 + $0x18] sm:$0xff]
    %v446 = vld [vmem:[%s10] sm:$0x1]
    %v448 = vlaneseq
    %v449 = vshrl.u32 %v448, 7
    %v450 = vsub.s32 0, %v449
    %v451 = vrot.slane %v446, %v450
    %v454 = vsel %vm197, %v441, 0
    %456 = vmatprep.subr.mxu0 0.0
    %457 = vmatpush1.msra.mxu0 %v442
    %458 = vmatprep.subr.mxu0 0.0
    %459 = vmatpush1.msra.mxu0 %v443
    %460 = vmatprep.subr.mxu0 0.0
    %461 = vmatpush1.msra.mxu0 %v444
    %462 = vmatprep.subr.mxu0 0.0
    %463 = vmatpush1.msra.mxu0 %v445
    %464 = vmatprep.subr.mxu0 0.0
    %465 = vmatpush1.msra.mxu0 0.0
    %466 = vmatprep.subr.mxu0 0.0
    %467 = vmatpush1.msra.mxu0 0.0
    %468 = vmatprep.subr.mxu0 0.0
    %469 = vmatpush1.msra.mxu0 0.0
    %470 = vmatprep.subr.mxu0 0.0
    %471 = vmatpush1.msra.mxu0 0.0
    %472 = vmatprep.subr.mxu0 0.0
    %473 = vmatpush1.msra.mxu0 0.0
    %474 = vmatprep.subr.mxu0 0.0
    %475 = vmatpush1.msra.mxu0 0.0
    %476 = vmatprep.subr.mxu0 0.0
    %477 = vmatpush1.msra.mxu0 0.0
    %478 = vmatprep.subr.mxu0 0.0
    %479 = vmatpush1.msra.mxu0 0.0
    %480 = vmatprep.subr.mxu0 0.0
    %481 = vmatpush1.msra.mxu0 0.0
    %482 = vmatprep.subr.mxu0 0.0
    %483 = vmatpush1.msra.mxu0 0.0
    %484 = vmatprep.subr.mxu0 0.0
    %485 = vmatpush1.msra.mxu0 0.0
    %486 = vmatprep.subr.mxu0 0.0
    %487 = vmatpush1.msra.mxu0 0.0
    %488 = vmatprep.subr.mxu0 0.0
    %489 = vmatpush1.msra.mxu0 0.0
    %490 = vmatprep.subr.mxu0 0.0
    %491 = vmatpush1.msra.mxu0 0.0
    %492 = vmatprep.subr.mxu0 0.0
    %493 = vmatpush1.msra.mxu0 0.0
    %494 = vmatprep.subr.mxu0 0.0
    %495 = vmatpush1.msra.mxu0 0.0
    %496 = vmatprep.subr.mxu0 0.0
    %497 = vmatpush1.msra.mxu0 0.0
    %498 = vmatprep.subr.mxu0 0.0
    %499 = vmatpush1.msra.mxu0 0.0
    %500 = vmatprep.subr.mxu0 0.0
    %501 = vmatpush1.msra.mxu0 0.0
    %502 = vmatprep.subr.mxu0 0.0
    %503 = vmatpush1.msra.mxu0 0.0
    %504 = vmatprep.subr.mxu0 0.0
    %505 = vmatpush1.msra.mxu0 0.0
    %506 = vmatprep.subr.mxu0 0.0
    %507 = vmatpush1.msra.mxu0 0.0
    %508 = vmatprep.subr.mxu0 0.0
    %509 = vmatpush1.msra.mxu0 0.0
    %510 = vmatprep.subr.mxu0 0.0
    %511 = vmatpush1.msra.mxu0 0.0
    %512 = vmatprep.subr.mxu0 0.0
    %513 = vmatpush1.msra.mxu0 0.0
    %514 = vmatprep.subr.mxu0 0.0
    %515 = vmatpush1.msra.mxu0 0.0
    %516 = vmatprep.subr.mxu0 0.0
    %517 = vmatpush1.msra.mxu0 0.0
    %518 = vmatprep.subr.mxu0 0.0
    %519 = vmatpush1.msra.mxu0 0.0
    %520 = vmatprep.mubr.f32.mxu0 0.0
    %521 = vmatmul.mubr.f32.gmra.mrb[0].mxu0 %v454
    %v522 = vpop.f32.mrb[0].mxu0
    %v523 = vadd.f32 %v451, %v522
    %v524 = vpop.f32.mrb[0].mxu0
    %525 = vdwg.mxu0
    %vm526 = vcmask 64512
    %527 = vst.msk [vmem:[#allocation11] sm:$0xff] %vm526, %v523
    // Predicated region
    $region66: #{tpu_custom_call.1} parent=1 // pred_check
      _
    $region67: #{tpu_custom_call.1} parent=1 // pred_check_branch
      %529 = sbr.rel (0) target = $region69
    $region68: #{tpu_custom_call.1} parent=1 // pred_region
      %s531 = ssub.s32 128, 128
      %532 = vsyncadd [#allocation4], %s531
      %s534 = sshll.u32 [#allocation11], 4
      %s535 = int_to_ptr.vmem [resolvable:$true] %s534
      %537 = dma.vmem_to_hbm [thread:$0]  %s535, 128, %s11, [#allocation4]
    $region69: #{tpu_custom_call.1} parent=1 // pred_fallthru
      _
    // Predicated region
    $region70: #{tpu_custom_call.1} parent=1 // pred_check
      _
    $region71: #{tpu_custom_call.1} parent=1 // pred_check_branch
      %539 = sbr.rel (0) target = $region73
    $region72: #{tpu_custom_call.1} parent=1 // pred_region
      %540 = dma.done [#allocation4], 128
    $region73: #{tpu_custom_call.1} parent=1 // pred_fallthru
      _
    %541 = vsyncpa [#allocation3], 1
    %542 = vsyncpa [#allocation6], 1
    %543 = vsyncpa [#allocation9], 1
    %544 = vsyncpa [#allocation4], 1

</llo_original>
